<compile_context>
chip_gen: v6e
topology: v6e:2x2x1
jax: 0.10.0
libtpu: 0.0.40
codegen_flags: <defaults>
</compile_context>

<pallas_src>
import functools

import jax
import jax.numpy as jnp
import numpy as np
from jax.experimental import pallas as pl
from jax.experimental.pallas import tpu as pltpu


def lstm_de_kernel(num_steps, hidden_dim,
                   x0_ref, h0_ref, c0_ref,
                   w_ih_ref, w_hh_ref, b_ref,
                   w_rec_ref, b_rec_ref,
                   w_out_row_ref, b_out_ref,
                   out_ref):
    H = hidden_dim
    mm_dtype = w_rec_ref.dtype      # matmul operand dtype (bf16 fast / f32 exact)

    w_ih = w_ih_ref[...]            # (1, 4H) f32, g-gate columns pre-scaled by 2
    w_hh = w_hh_ref[...]            # (H, 4H) mm_dtype (step-0 recurrent weight)
    b = b_ref[...]                  # (1, 4H) f32  (b_ih + b_hh, g cols scaled)
    w_rec = w_rec_ref[...]          # (H, 4H) mm_dtype (feedback + g-scale folded)
    b_rec = b_rec_ref[...]          # (1, 4H) f32
    w_out_row = w_out_row_ref[...]  # (1, H)  f32
    b_out = b_out_ref[...]          # (1, 1)  f32

    def cell(gates, c):
        # Single full-(B,4H)-vreg EUP push. Gate order (PyTorch): i, f, g, o.
        # The g-gate pre-activation was scaled by 2 in the wrapper, so
        # tanh(x) = 2*sigmoid(2x) - 1 falls out of the same sigmoid (one cheap
        # VPU fma replaces a second full-vreg tanh on the serial chain).
        sig = jax.nn.sigmoid(gates)
        i_g = sig[:, 0 * H:1 * H]
        f_g = sig[:, 1 * H:2 * H]
        g_g = 2.0 * sig[:, 2 * H:3 * H] - 1.0
        o_g = sig[:, 3 * H:4 * H]
        c_new = f_g * c + i_g * g_g
        h_new = o_g * jnp.tanh(c_new)
        return h_new, c_new

    # ---- step 0: external scalar input x0 ----
    gates = (x0_ref[...] * w_ih
             + jnp.dot(h0_ref[...].astype(mm_dtype), w_hh,
                       preferred_element_type=jnp.float32)
             + b)
    h, c = cell(gates, c0_ref[...])
    hs = [h]

    # ---- steps 1..T-1: feedback folded into w_rec / b_rec ----
    # Fully unrolled (static T): single basic block, max LLO visibility.
    for _ in range(1, num_steps):
        gates = jnp.dot(h.astype(mm_dtype), w_rec,
                        preferred_element_type=jnp.float32) + b_rec
        h, c = cell(gates, c)
        hs.append(h)

    # ---- output projection + single store, off the recurrence critical path ----
    ys = [jnp.sum(h_t * w_out_row, axis=-1, keepdims=True) + b_out for h_t in hs]
    out_ref[...] = jnp.concatenate(ys, axis=1)   # one (B, T) store


def lstm_de_forward(params, x, h0, c0, num_steps, *, matmul_dtype=jnp.bfloat16):
    """x: (B, 1); h0, c0: (1, B, H) (PyTorch hidden layout). Returns (B, num_steps)."""
    B = x.shape[0]
    H = h0.shape[-1]
    h0_2d = h0.reshape(B, H).astype(jnp.float32)
    c0_2d = c0.reshape(B, H).astype(jnp.float32)

    w_ih = params["w_ih_t"]        # (1, 4H)
    w_hh = params["w_hh_t"]        # (H, 4H)
    b = params["b"]                # (1, 4H)
    w_out = params["w_out_t"]      # (H, 1)
    b_out = params["b_out"]        # (1, 1)

    # Fold a 2x scale into the g-gate columns so the kernel can use
    # tanh(x) = 2*sigmoid(2x) - 1 from a single sigmoid push.
    g_scale = jnp.concatenate(
        [jnp.ones((1, 2 * H), jnp.float32),
         jnp.full((1, H), 2.0, jnp.float32),
         jnp.ones((1, H), jnp.float32)], axis=1)
    w_ih_s = w_ih * g_scale
    w_hh_s = w_hh * g_scale
    b_s = b * g_scale

    # Fold the autoregressive feedback path into the recurrent matmul (once, in
    # the wrapper). Computed from the g-scaled matrices so both folds compose.
    w_rec = w_hh_s + w_out @ w_ih_s            # (H, 4H)
    b_rec = b_s + b_out * w_ih_s               # (1, 4H)
    w_out_row = w_out.reshape(1, H)            # (1, H) for VPU-mul + lane-reduce

    kernel = functools.partial(lstm_de_kernel, num_steps, H)
    vmem = pl.BlockSpec(memory_space=pltpu.MemorySpace.VMEM)
    # Gridless: ~70 KB footprint, no tiling needed. Scaling lever on v7x/v6e is
    # packing more independent decodes / batch rows per call (MXU height), or a
    # leading "parallel" grid axis over decode groups — not applicable at B=8.
    return pl.pallas_call(
        kernel,
        out_shape=jax.ShapeDtypeStruct((B, num_steps), jnp.float32),
        in_specs=[vmem] * 10,
        out_specs=vmem,
    )(x.astype(jnp.float32), h0_2d, c0_2d,
      w_ih_s, w_hh_s.astype(matmul_dtype), b_s,
      w_rec.astype(matmul_dtype), b_rec, w_out_row, b_out)


def init_params(key, hidden_dim):
    """Deterministic init matching nn.LSTM / nn.Linear shapes (uniform +-1/sqrt(H))."""
    H = hidden_dim
    k = 1.0 / np.sqrt(H)
    ks = jax.random.split(key, 6)
    w_ih = jax.random.uniform(ks[0], (4 * H, 1), minval=-k, maxval=k)   # weight_ih_l0
    w_hh = jax.random.uniform(ks[1], (4 * H, H), minval=-k, maxval=k)   # weight_hh_l0
    b_ih = jax.random.uniform(ks[2], (4 * H,), minval=-k, maxval=k)
    b_hh = jax.random.uniform(ks[3], (4 * H,), minval=-k, maxval=k)
    w_out = jax.random.uniform(ks[4], (1, H), minval=-k, maxval=k)      # Linear weight
    b_out = jax.random.uniform(ks[5], (1,), minval=-k, maxval=k)
    return {
        "w_ih_t": w_ih.T.astype(jnp.float32),                 # (1, 4H)
        "w_hh_t": w_hh.T.astype(jnp.float32),                 # (H, 4H)
        "b": (b_ih + b_hh).reshape(1, 4 * H).astype(jnp.float32),
        "w_out_t": w_out.T.astype(jnp.float32),               # (H, 1)
        "b_out": b_out.reshape(1, 1).astype(jnp.float32),
    }


def lstm_de_reference(params, x, h0, c0, num_steps):
    """Pure-JAX reference of the PyTorch forward pass (unfolded feedback, f32)."""
    B, H = h0.shape[-2], h0.shape[-1]
    h = h0.reshape(B, H)
    c = c0.reshape(B, H)
    w_ih, w_hh, b = params["w_ih_t"], params["w_hh_t"], params["b"]
    w_out, b_out = params["w_out_t"], params["b_out"]
    xs = x
    outs = []
    for _ in range(num_steps):
        gates = xs * w_ih + h @ w_hh + b
        i = jax.nn.sigmoid(gates[:, :H])
        f = jax.nn.sigmoid(gates[:, H:2 * H])
        g = jnp.tanh(gates[:, 2 * H:3 * H])
        o = jax.nn.sigmoid(gates[:, 3 * H:])
        c = f * c + i * g
        h = o * jnp.tanh(c)
        y = h @ w_out + b_out                     # (B, 1)
        outs.append(y[:, 0])
        xs = y
    return jnp.stack(outs, axis=1)                # (B, num_steps)


if __name__ == "__main__":
    key = jax.random.PRNGKey(0)
    B, H, T = 8, 32, 8   # batch, hidden_dim, num_steps  (4H = 128 -> lane-aligned)

    k_param, k_x, k_h, k_c = jax.random.split(key, 4)
    params = init_params(k_param, H)
    x = jax.random.normal(k_x, (B, 1), dtype=jnp.float32)
    h0 = jax.random.normal(k_h, (1, B, H), dtype=jnp.float32)   # (num_layers, B, H)
    c0 = jax.random.normal(k_c, (1, B, H), dtype=jnp.float32)

    ref = lstm_de_reference(params, x, h0, c0, T)

    # 1) Exact-precision path (f32 matmul): tight tolerance. Residual error is
    #    only the f32 feedback-fold reassociation and hardware sigmoid-vs-tanh
    #    approximation difference in the 2*sigmoid(2x)-1 identity.
    out_f32 = lstm_de_forward(params, x, h0, c0, T, matmul_dtype=jnp.float32)
    out_f32 = jax.block_until_ready(out_f32)
    np.testing.assert_allclose(np.asarray(out_f32), np.asarray(ref),
                               rtol=1e-4, atol=1e-4)

    # 2) Fast path (bf16 matmul operands, f32 accumulate): single MXU pass per
    #    step. bf16 rounding compounds over the T-step recurrence -> looser tol.
    out_bf16 = lstm_de_forward(params, x, h0, c0, T, matmul_dtype=jnp.bfloat16)
    out_bf16 = jax.block_until_ready(out_bf16)
    np.testing.assert_allclose(np.asarray(out_bf16), np.asarray(ref),
                               rtol=2e-2, atol=2e-2)

    assert out_f32.shape == (B, T) and out_bf16.shape == (B, T)
    print("KERNEL_OK")
</pallas_src>

<mosaic_0001>
module attributes {stable_mosaic.version = 11 : i64} {
  func.func @lstm_de_kernel(%arg0: memref<8x1xf32, #tpu.memory_space<vmem>>, %arg1: memref<8x32xf32, #tpu.memory_space<vmem>>, %arg2: memref<8x32xf32, #tpu.memory_space<vmem>>, %arg3: memref<1x128xf32, #tpu.memory_space<vmem>>, %arg4: memref<32x128xf32, #tpu.memory_space<vmem>>, %arg5: memref<1x128xf32, #tpu.memory_space<vmem>>, %arg6: memref<32x128xf32, #tpu.memory_space<vmem>>, %arg7: memref<1x128xf32, #tpu.memory_space<vmem>>, %arg8: memref<1x32xf32, #tpu.memory_space<vmem>>, %arg9: memref<1x1xf32, #tpu.memory_space<vmem>>, %arg10: memref<8x8xf32, #tpu.memory_space<vmem>>) attributes {dimension_semantics = [], scalar_prefetch = 0 : i64, scratch_operands = 0 : i64, tpu.core_type = #tpu.core_type<tc>} {
    %c0 = arith.constant 0 : index
    %c0_0 = arith.constant 0 : index
    %0 = vector.load %arg3[%c0, %c0_0] : memref<1x128xf32, #tpu.memory_space<vmem>>, vector<1x128xf32>
    %c0_1 = arith.constant 0 : index
    %c0_2 = arith.constant 0 : index
    %1 = vector.load %arg4[%c0_1, %c0_2] : memref<32x128xf32, #tpu.memory_space<vmem>>, vector<32x128xf32>
    %c0_3 = arith.constant 0 : index
    %c0_4 = arith.constant 0 : index
    %2 = vector.load %arg5[%c0_3, %c0_4] : memref<1x128xf32, #tpu.memory_space<vmem>>, vector<1x128xf32>
    %c0_5 = arith.constant 0 : index
    %c0_6 = arith.constant 0 : index
    %3 = vector.load %arg6[%c0_5, %c0_6] : memref<32x128xf32, #tpu.memory_space<vmem>>, vector<32x128xf32>
    %c0_7 = arith.constant 0 : index
    %c0_8 = arith.constant 0 : index
    %4 = vector.load %arg7[%c0_7, %c0_8] : memref<1x128xf32, #tpu.memory_space<vmem>>, vector<1x128xf32>
    %c0_9 = arith.constant 0 : index
    %c0_10 = arith.constant 0 : index
    %5 = vector.load %arg8[%c0_9, %c0_10] : memref<1x32xf32, #tpu.memory_space<vmem>>, vector<1x32xf32>
    %c0_11 = arith.constant 0 : index
    %c0_12 = arith.constant 0 : index
    %6 = vector.load %arg9[%c0_11, %c0_12] : memref<1x1xf32, #tpu.memory_space<vmem>>, vector<1x1xf32>
    %c0_13 = arith.constant 0 : index
    %c0_14 = arith.constant 0 : index
    %7 = vector.load %arg0[%c0_13, %c0_14] : memref<8x1xf32, #tpu.memory_space<vmem>>, vector<8x1xf32>
    %8 = vector.broadcast %7 : vector<8x1xf32> to vector<8x128xf32>
    %9 = vector.broadcast %0 : vector<1x128xf32> to vector<8x128xf32>
    %10 = arith.mulf %8, %9 : vector<8x128xf32>
    %c0_15 = arith.constant 0 : index
    %c0_16 = arith.constant 0 : index
    %11 = vector.load %arg1[%c0_15, %c0_16] : memref<8x32xf32, #tpu.memory_space<vmem>>, vector<8x32xf32>
    %cst = arith.constant dense<0.000000e+00> : vector<8x128xf32>
    %12 = tpu.matmul %11, %1, %cst {dimension_numbers = #tpu.dot_dimension_numbers<[1], [0], [0], [1], [0, 0, 1, 1], [], []>} : vector<8x32xf32>, vector<32x128xf32>, vector<8x128xf32> -> vector<8x128xf32>
    %13 = arith.addf %10, %12 : vector<8x128xf32>
    %14 = vector.broadcast %2 : vector<1x128xf32> to vector<8x128xf32>
    %15 = arith.addf %13, %14 : vector<8x128xf32>
    %c0_17 = arith.constant 0 : index
    %c0_18 = arith.constant 0 : index
    %16 = vector.load %arg2[%c0_17, %c0_18] : memref<8x32xf32, #tpu.memory_space<vmem>>, vector<8x32xf32>
    %17 = arith.negf %15 : vector<8x128xf32>
    %18 = math.exp %17 : vector<8x128xf32>
    %cst_19 = arith.constant 1.000000e+00 : f32
    %19 = vector.broadcast %cst_19 : f32 to vector<8x128xf32>
    %20 = arith.addf %19, %18 : vector<8x128xf32>
    %21 = arith.divf %19, %20 : vector<8x128xf32>
    %22 = vector.extract_strided_slice %21 {offsets = [0, 0], sizes = [8, 32], strides = [1, 1]} : vector<8x128xf32> to vector<8x32xf32>
    %23 = vector.extract_strided_slice %21 {offsets = [0, 32], sizes = [8, 32], strides = [1, 1]} : vector<8x128xf32> to vector<8x32xf32>
    %24 = vector.extract_strided_slice %21 {offsets = [0, 64], sizes = [8, 32], strides = [1, 1]} : vector<8x128xf32> to vector<8x32xf32>
    %cst_20 = arith.constant 2.000000e+00 : f32
    %25 = vector.broadcast %cst_20 : f32 to vector<8x32xf32>
    %26 = arith.mulf %25, %24 : vector<8x32xf32>
    %cst_21 = arith.constant 1.000000e+00 : f32
    %27 = vector.broadcast %cst_21 : f32 to vector<8x32xf32>
    %28 = arith.subf %26, %27 : vector<8x32xf32>
    %29 = vector.extract_strided_slice %21 {offsets = [0, 96], sizes = [8, 32], strides = [1, 1]} : vector<8x128xf32> to vector<8x32xf32>
    %30 = arith.mulf %23, %16 : vector<8x32xf32>
    %31 = arith.mulf %22, %28 : vector<8x32xf32>
    %32 = arith.addf %30, %31 : vector<8x32xf32>
    %33 = math.tanh %32 : vector<8x32xf32>
    %34 = arith.mulf %29, %33 : vector<8x32xf32>
    %cst_22 = arith.constant dense<0.000000e+00> : vector<8x128xf32>
    %35 = tpu.matmul %34, %3, %cst_22 {dimension_numbers = #tpu.dot_dimension_numbers<[1], [0], [0], [1], [0, 0, 1, 1], [], []>} : vector<8x32xf32>, vector<32x128xf32>, vector<8x128xf32> -> vector<8x128xf32>
    %36 = vector.broadcast %4 : vector<1x128xf32> to vector<8x128xf32>
    %37 = arith.addf %35, %36 : vector<8x128xf32>
    %38 = arith.negf %37 : vector<8x128xf32>
    %39 = math.exp %38 : vector<8x128xf32>
    %cst_23 = arith.constant 1.000000e+00 : f32
    %40 = vector.broadcast %cst_23 : f32 to vector<8x128xf32>
    %41 = arith.addf %40, %39 : vector<8x128xf32>
    %42 = arith.divf %40, %41 : vector<8x128xf32>
    %43 = vector.extract_strided_slice %42 {offsets = [0, 0], sizes = [8, 32], strides = [1, 1]} : vector<8x128xf32> to vector<8x32xf32>
    %44 = vector.extract_strided_slice %42 {offsets = [0, 32], sizes = [8, 32], strides = [1, 1]} : vector<8x128xf32> to vector<8x32xf32>
    %45 = vector.extract_strided_slice %42 {offsets = [0, 64], sizes = [8, 32], strides = [1, 1]} : vector<8x128xf32> to vector<8x32xf32>
    %cst_24 = arith.constant 2.000000e+00 : f32
    %46 = vector.broadcast %cst_24 : f32 to vector<8x32xf32>
    %47 = arith.mulf %46, %45 : vector<8x32xf32>
    %cst_25 = arith.constant 1.000000e+00 : f32
    %48 = vector.broadcast %cst_25 : f32 to vector<8x32xf32>
    %49 = arith.subf %47, %48 : vector<8x32xf32>
    %50 = vector.extract_strided_slice %42 {offsets = [0, 96], sizes = [8, 32], strides = [1, 1]} : vector<8x128xf32> to vector<8x32xf32>
    %51 = arith.mulf %44, %32 : vector<8x32xf32>
    %52 = arith.mulf %43, %49 : vector<8x32xf32>
    %53 = arith.addf %51, %52 : vector<8x32xf32>
    %54 = math.tanh %53 : vector<8x32xf32>
    %55 = arith.mulf %50, %54 : vector<8x32xf32>
    %cst_26 = arith.constant dense<0.000000e+00> : vector<8x128xf32>
    %56 = tpu.matmul %55, %3, %cst_26 {dimension_numbers = #tpu.dot_dimension_numbers<[1], [0], [0], [1], [0, 0, 1, 1], [], []>} : vector<8x32xf32>, vector<32x128xf32>, vector<8x128xf32> -> vector<8x128xf32>
    %57 = vector.broadcast %4 : vector<1x128xf32> to vector<8x128xf32>
    %58 = arith.addf %56, %57 : vector<8x128xf32>
    %59 = arith.negf %58 : vector<8x128xf32>
    %60 = math.exp %59 : vector<8x128xf32>
    %cst_27 = arith.constant 1.000000e+00 : f32
    %61 = vector.broadcast %cst_27 : f32 to vector<8x128xf32>
    %62 = arith.addf %61, %60 : vector<8x128xf32>
    %63 = arith.divf %61, %62 : vector<8x128xf32>
    %64 = vector.extract_strided_slice %63 {offsets = [0, 0], sizes = [8, 32], strides = [1, 1]} : vector<8x128xf32> to vector<8x32xf32>
    %65 = vector.extract_strided_slice %63 {offsets = [0, 32], sizes = [8, 32], strides = [1, 1]} : vector<8x128xf32> to vector<8x32xf32>
    %66 = vector.extract_strided_slice %63 {offsets = [0, 64], sizes = [8, 32], strides = [1, 1]} : vector<8x128xf32> to vector<8x32xf32>
    %cst_28 = arith.constant 2.000000e+00 : f32
    %67 = vector.broadcast %cst_28 : f32 to vector<8x32xf32>
    %68 = arith.mulf %67, %66 : vector<8x32xf32>
    %cst_29 = arith.constant 1.000000e+00 : f32
    %69 = vector.broadcast %cst_29 : f32 to vector<8x32xf32>
    %70 = arith.subf %68, %69 : vector<8x32xf32>
    %71 = vector.extract_strided_slice %63 {offsets = [0, 96], sizes = [8, 32], strides = [1, 1]} : vector<8x128xf32> to vector<8x32xf32>
    %72 = arith.mulf %65, %53 : vector<8x32xf32>
    %73 = arith.mulf %64, %70 : vector<8x32xf32>
    %74 = arith.addf %72, %73 : vector<8x32xf32>
    %75 = math.tanh %74 : vector<8x32xf32>
    %76 = arith.mulf %71, %75 : vector<8x32xf32>
    %cst_30 = arith.constant dense<0.000000e+00> : vector<8x128xf32>
    %77 = tpu.matmul %76, %3, %cst_30 {dimension_numbers = #tpu.dot_dimension_numbers<[1], [0], [0], [1], [0, 0, 1, 1], [], []>} : vector<8x32xf32>, vector<32x128xf32>, vector<8x128xf32> -> vector<8x128xf32>
    %78 = vector.broadcast %4 : vector<1x128xf32> to vector<8x128xf32>
    %79 = arith.addf %77, %78 : vector<8x128xf32>
    %80 = arith.negf %79 : vector<8x128xf32>
    %81 = math.exp %80 : vector<8x128xf32>
    %cst_31 = arith.constant 1.000000e+00 : f32
    %82 = vector.broadcast %cst_31 : f32 to vector<8x128xf32>
    %83 = arith.addf %82, %81 : vector<8x128xf32>
    %84 = arith.divf %82, %83 : vector<8x128xf32>
    %85 = vector.extract_strided_slice %84 {offsets = [0, 0], sizes = [8, 32], strides = [1, 1]} : vector<8x128xf32> to vector<8x32xf32>
    %86 = vector.extract_strided_slice %84 {offsets = [0, 32], sizes = [8, 32], strides = [1, 1]} : vector<8x128xf32> to vector<8x32xf32>
    %87 = vector.extract_strided_slice %84 {offsets = [0, 64], sizes = [8, 32], strides = [1, 1]} : vector<8x128xf32> to vector<8x32xf32>
    %cst_32 = arith.constant 2.000000e+00 : f32
    %88 = vector.broadcast %cst_32 : f32 to vector<8x32xf32>
    %89 = arith.mulf %88, %87 : vector<8x32xf32>
    %cst_33 = arith.constant 1.000000e+00 : f32
    %90 = vector.broadcast %cst_33 : f32 to vector<8x32xf32>
    %91 = arith.subf %89, %90 : vector<8x32xf32>
    %92 = vector.extract_strided_slice %84 {offsets = [0, 96], sizes = [8, 32], strides = [1, 1]} : vector<8x128xf32> to vector<8x32xf32>
    %93 = arith.mulf %86, %74 : vector<8x32xf32>
    %94 = arith.mulf %85, %91 : vector<8x32xf32>
    %95 = arith.addf %93, %94 : vector<8x32xf32>
    %96 = math.tanh %95 : vector<8x32xf32>
    %97 = arith.mulf %92, %96 : vector<8x32xf32>
    %cst_34 = arith.constant dense<0.000000e+00> : vector<8x128xf32>
    %98 = tpu.matmul %97, %3, %cst_34 {dimension_numbers = #tpu.dot_dimension_numbers<[1], [0], [0], [1], [0, 0, 1, 1], [], []>} : vector<8x32xf32>, vector<32x128xf32>, vector<8x128xf32> -> vector<8x128xf32>
    %99 = vector.broadcast %4 : vector<1x128xf32> to vector<8x128xf32>
    %100 = arith.addf %98, %99 : vector<8x128xf32>
    %101 = arith.negf %100 : vector<8x128xf32>
    %102 = math.exp %101 : vector<8x128xf32>
    %cst_35 = arith.constant 1.000000e+00 : f32
    %103 = vector.broadcast %cst_35 : f32 to vector<8x128xf32>
    %104 = arith.addf %103, %102 : vector<8x128xf32>
    %105 = arith.divf %103, %104 : vector<8x128xf32>
    %106 = vector.extract_strided_slice %105 {offsets = [0, 0], sizes = [8, 32], strides = [1, 1]} : vector<8x128xf32> to vector<8x32xf32>
    %107 = vector.extract_strided_slice %105 {offsets = [0, 32], sizes = [8, 32], strides = [1, 1]} : vector<8x128xf32> to vector<8x32xf32>
    %108 = vector.extract_strided_slice %105 {offsets = [0, 64], sizes = [8, 32], strides = [1, 1]} : vector<8x128xf32> to vector<8x32xf32>
    %cst_36 = arith.constant 2.000000e+00 : f32
    %109 = vector.broadcast %cst_36 : f32 to vector<8x32xf32>
    %110 = arith.mulf %109, %108 : vector<8x32xf32>
    %cst_37 = arith.constant 1.000000e+00 : f32
    %111 = vector.broadcast %cst_37 : f32 to vector<8x32xf32>
    %112 = arith.subf %110, %111 : vector<8x32xf32>
    %113 = vector.extract_strided_slice %105 {offsets = [0, 96], sizes = [8, 32], strides = [1, 1]} : vector<8x128xf32> to vector<8x32xf32>
    %114 = arith.mulf %107, %95 : vector<8x32xf32>
    %115 = arith.mulf %106, %112 : vector<8x32xf32>
    %116 = arith.addf %114, %115 : vector<8x32xf32>
    %117 = math.tanh %116 : vector<8x32xf32>
    %118 = arith.mulf %113, %117 : vector<8x32xf32>
    %cst_38 = arith.constant dense<0.000000e+00> : vector<8x128xf32>
    %119 = tpu.matmul %118, %3, %cst_38 {dimension_numbers = #tpu.dot_dimension_numbers<[1], [0], [0], [1], [0, 0, 1, 1], [], []>} : vector<8x32xf32>, vector<32x128xf32>, vector<8x128xf32> -> vector<8x128xf32>
    %120 = vector.broadcast %4 : vector<1x128xf32> to vector<8x128xf32>
    %121 = arith.addf %119, %120 : vector<8x128xf32>
    %122 = arith.negf %121 : vector<8x128xf32>
    %123 = math.exp %122 : vector<8x128xf32>
    %cst_39 = arith.constant 1.000000e+00 : f32
    %124 = vector.broadcast %cst_39 : f32 to vector<8x128xf32>
    %125 = arith.addf %124, %123 : vector<8x128xf32>
    %126 = arith.divf %124, %125 : vector<8x128xf32>
    %127 = vector.extract_strided_slice %126 {offsets = [0, 0], sizes = [8, 32], strides = [1, 1]} : vector<8x128xf32> to vector<8x32xf32>
    %128 = vector.extract_strided_slice %126 {offsets = [0, 32], sizes = [8, 32], strides = [1, 1]} : vector<8x128xf32> to vector<8x32xf32>
    %129 = vector.extract_strided_slice %126 {offsets = [0, 64], sizes = [8, 32], strides = [1, 1]} : vector<8x128xf32> to vector<8x32xf32>
    %cst_40 = arith.constant 2.000000e+00 : f32
    %130 = vector.broadcast %cst_40 : f32 to vector<8x32xf32>
    %131 = arith.mulf %130, %129 : vector<8x32xf32>
    %cst_41 = arith.constant 1.000000e+00 : f32
    %132 = vector.broadcast %cst_41 : f32 to vector<8x32xf32>
    %133 = arith.subf %131, %132 : vector<8x32xf32>
    %134 = vector.extract_strided_slice %126 {offsets = [0, 96], sizes = [8, 32], strides = [1, 1]} : vector<8x128xf32> to vector<8x32xf32>
    %135 = arith.mulf %128, %116 : vector<8x32xf32>
    %136 = arith.mulf %127, %133 : vector<8x32xf32>
    %137 = arith.addf %135, %136 : vector<8x32xf32>
    %138 = math.tanh %137 : vector<8x32xf32>
    %139 = arith.mulf %134, %138 : vector<8x32xf32>
    %cst_42 = arith.constant dense<0.000000e+00> : vector<8x128xf32>
    %140 = tpu.matmul %139, %3, %cst_42 {dimension_numbers = #tpu.dot_dimension_numbers<[1], [0], [0], [1], [0, 0, 1, 1], [], []>} : vector<8x32xf32>, vector<32x128xf32>, vector<8x128xf32> -> vector<8x128xf32>
    %141 = vector.broadcast %4 : vector<1x128xf32> to vector<8x128xf32>
    %142 = arith.addf %140, %141 : vector<8x128xf32>
    %143 = arith.negf %142 : vector<8x128xf32>
    %144 = math.exp %143 : vector<8x128xf32>
    %cst_43 = arith.constant 1.000000e+00 : f32
    %145 = vector.broadcast %cst_43 : f32 to vector<8x128xf32>
    %146 = arith.addf %145, %144 : vector<8x128xf32>
    %147 = arith.divf %145, %146 : vector<8x128xf32>
    %148 = vector.extract_strided_slice %147 {offsets = [0, 0], sizes = [8, 32], strides = [1, 1]} : vector<8x128xf32> to vector<8x32xf32>
    %149 = vector.extract_strided_slice %147 {offsets = [0, 32], sizes = [8, 32], strides = [1, 1]} : vector<8x128xf32> to vector<8x32xf32>
    %150 = vector.extract_strided_slice %147 {offsets = [0, 64], sizes = [8, 32], strides = [1, 1]} : vector<8x128xf32> to vector<8x32xf32>
    %cst_44 = arith.constant 2.000000e+00 : f32
    %151 = vector.broadcast %cst_44 : f32 to vector<8x32xf32>
    %152 = arith.mulf %151, %150 : vector<8x32xf32>
    %cst_45 = arith.constant 1.000000e+00 : f32
    %153 = vector.broadcast %cst_45 : f32 to vector<8x32xf32>
    %154 = arith.subf %152, %153 : vector<8x32xf32>
    %155 = vector.extract_strided_slice %147 {offsets = [0, 96], sizes = [8, 32], strides = [1, 1]} : vector<8x128xf32> to vector<8x32xf32>
    %156 = arith.mulf %149, %137 : vector<8x32xf32>
    %157 = arith.mulf %148, %154 : vector<8x32xf32>
    %158 = arith.addf %156, %157 : vector<8x32xf32>
    %159 = math.tanh %158 : vector<8x32xf32>
    %160 = arith.mulf %155, %159 : vector<8x32xf32>
    %cst_46 = arith.constant dense<0.000000e+00> : vector<8x128xf32>
    %161 = tpu.matmul %160, %3, %cst_46 {dimension_numbers = #tpu.dot_dimension_numbers<[1], [0], [0], [1], [0, 0, 1, 1], [], []>} : vector<8x32xf32>, vector<32x128xf32>, vector<8x128xf32> -> vector<8x128xf32>
    %162 = vector.broadcast %4 : vector<1x128xf32> to vector<8x128xf32>
    %163 = arith.addf %161, %162 : vector<8x128xf32>
    %164 = arith.negf %163 : vector<8x128xf32>
    %165 = math.exp %164 : vector<8x128xf32>
    %cst_47 = arith.constant 1.000000e+00 : f32
    %166 = vector.broadcast %cst_47 : f32 to vector<8x128xf32>
    %167 = arith.addf %166, %165 : vector<8x128xf32>
    %168 = arith.divf %166, %167 : vector<8x128xf32>
    %169 = vector.extract_strided_slice %168 {offsets = [0, 0], sizes = [8, 32], strides = [1, 1]} : vector<8x128xf32> to vector<8x32xf32>
    %170 = vector.extract_strided_slice %168 {offsets = [0, 32], sizes = [8, 32], strides = [1, 1]} : vector<8x128xf32> to vector<8x32xf32>
    %171 = vector.extract_strided_slice %168 {offsets = [0, 64], sizes = [8, 32], strides = [1, 1]} : vector<8x128xf32> to vector<8x32xf32>
    %cst_48 = arith.constant 2.000000e+00 : f32
    %172 = vector.broadcast %cst_48 : f32 to vector<8x32xf32>
    %173 = arith.mulf %172, %171 : vector<8x32xf32>
    %cst_49 = arith.constant 1.000000e+00 : f32
    %174 = vector.broadcast %cst_49 : f32 to vector<8x32xf32>
    %175 = arith.subf %173, %174 : vector<8x32xf32>
    %176 = vector.extract_strided_slice %168 {offsets = [0, 96], sizes = [8, 32], strides = [1, 1]} : vector<8x128xf32> to vector<8x32xf32>
    %177 = arith.mulf %170, %158 : vector<8x32xf32>
    %178 = arith.mulf %169, %175 : vector<8x32xf32>
    %179 = arith.addf %177, %178 : vector<8x32xf32>
    %180 = math.tanh %179 : vector<8x32xf32>
    %181 = arith.mulf %176, %180 : vector<8x32xf32>
    %182 = vector.broadcast %5 : vector<1x32xf32> to vector<8x32xf32>
    %183 = arith.mulf %34, %182 : vector<8x32xf32>
    %cst_50 = arith.constant dense<0.000000e+00> : vector<8xf32>
    %184 = vector.multi_reduction <add>, %183, %cst_50 [1] : vector<8x32xf32> to vector<8xf32>
    %185 = vector.shape_cast %184 : vector<8xf32> to vector<8x1xf32>
    %186 = vector.broadcast %6 : vector<1x1xf32> to vector<8x1xf32>
    %187 = arith.addf %185, %186 : vector<8x1xf32>
    %188 = vector.broadcast %5 : vector<1x32xf32> to vector<8x32xf32>
    %189 = arith.mulf %55, %188 : vector<8x32xf32>
    %cst_51 = arith.constant dense<0.000000e+00> : vector<8xf32>
    %190 = vector.multi_reduction <add>, %189, %cst_51 [1] : vector<8x32xf32> to vector<8xf32>
    %191 = vector.shape_cast %190 : vector<8xf32> to vector<8x1xf32>
    %192 = vector.broadcast %6 : vector<1x1xf32> to vector<8x1xf32>
    %193 = arith.addf %191, %192 : vector<8x1xf32>
    %194 = vector.broadcast %5 : vector<1x32xf32> to vector<8x32xf32>
    %195 = arith.mulf %76, %194 : vector<8x32xf32>
    %cst_52 = arith.constant dense<0.000000e+00> : vector<8xf32>
    %196 = vector.multi_reduction <add>, %195, %cst_52 [1] : vector<8x32xf32> to vector<8xf32>
    %197 = vector.shape_cast %196 : vector<8xf32> to vector<8x1xf32>
    %198 = vector.broadcast %6 : vector<1x1xf32> to vector<8x1xf32>
    %199 = arith.addf %197, %198 : vector<8x1xf32>
    %200 = vector.broadcast %5 : vector<1x32xf32> to vector<8x32xf32>
    %201 = arith.mulf %97, %200 : vector<8x32xf32>
    %cst_53 = arith.constant dense<0.000000e+00> : vector<8xf32>
    %202 = vector.multi_reduction <add>, %201, %cst_53 [1] : vector<8x32xf32> to vector<8xf32>
    %203 = vector.shape_cast %202 : vector<8xf32> to vector<8x1xf32>
    %204 = vector.broadcast %6 : vector<1x1xf32> to vector<8x1xf32>
    %205 = arith.addf %203, %204 : vector<8x1xf32>
    %206 = vector.broadcast %5 : vector<1x32xf32> to vector<8x32xf32>
    %207 = arith.mulf %118, %206 : vector<8x32xf32>
    %cst_54 = arith.constant dense<0.000000e+00> : vector<8xf32>
    %208 = vector.multi_reduction <add>, %207, %cst_54 [1] : vector<8x32xf32> to vector<8xf32>
    %209 = vector.shape_cast %208 : vector<8xf32> to vector<8x1xf32>
    %210 = vector.broadcast %6 : vector<1x1xf32> to vector<8x1xf32>
    %211 = arith.addf %209, %210 : vector<8x1xf32>
    %212 = vector.broadcast %5 : vector<1x32xf32> to vector<8x32xf32>
    %213 = arith.mulf %139, %212 : vector<8x32xf32>
    %cst_55 = arith.constant dense<0.000000e+00> : vector<8xf32>
    %214 = vector.multi_reduction <add>, %213, %cst_55 [1] : vector<8x32xf32> to vector<8xf32>
    %215 = vector.shape_cast %214 : vector<8xf32> to vector<8x1xf32>
    %216 = vector.broadcast %6 : vector<1x1xf32> to vector<8x1xf32>
    %217 = arith.addf %215, %216 : vector<8x1xf32>
    %218 = vector.broadcast %5 : vector<1x32xf32> to vector<8x32xf32>
    %219 = arith.mulf %160, %218 : vector<8x32xf32>
    %cst_56 = arith.constant dense<0.000000e+00> : vector<8xf32>
    %220 = vector.multi_reduction <add>, %219, %cst_56 [1] : vector<8x32xf32> to vector<8xf32>
    %221 = vector.shape_cast %220 : vector<8xf32> to vector<8x1xf32>
    %222 = vector.broadcast %6 : vector<1x1xf32> to vector<8x1xf32>
    %223 = arith.addf %221, %222 : vector<8x1xf32>
    %224 = vector.broadcast %5 : vector<1x32xf32> to vector<8x32xf32>
    %225 = arith.mulf %181, %224 : vector<8x32xf32>
    %cst_57 = arith.constant dense<0.000000e+00> : vector<8xf32>
    %226 = vector.multi_reduction <add>, %225, %cst_57 [1] : vector<8x32xf32> to vector<8xf32>
    %227 = vector.shape_cast %226 : vector<8xf32> to vector<8x1xf32>
    %228 = vector.broadcast %6 : vector<1x1xf32> to vector<8x1xf32>
    %229 = arith.addf %227, %228 : vector<8x1xf32>
    %230 = tpu.concatenate %187, %193, %199, %205, %211, %217, %223, %229 in 1 : vector<8x1xf32>, vector<8x1xf32>, vector<8x1xf32>, vector<8x1xf32>, vector<8x1xf32>, vector<8x1xf32>, vector<8x1xf32>, vector<8x1xf32> -> vector<8x8xf32>
    %c0_58 = arith.constant 0 : index
    %c0_59 = arith.constant 0 : index
    %231 = vector.load %arg10[%c0_58, %c0_59] : memref<8x8xf32, #tpu.memory_space<vmem>>, vector<8x8xf32>
    tpu.vector_store %arg10[%c0_58, %c0_59], %230 {strides = array<i32>} : memref<8x8xf32, #tpu.memory_space<vmem>>, vector<8x8xf32>,
    return
  }
}

</mosaic_0001>

<llo_original>
// kernel: tpu_custom_call.1
$region0: #{tpu_custom_call.1}
  #allocation0 [shape = 'u32[]', space=smem, size = 0x4, offset = 0x4, fixed_abs, tag = 'smem constant byte address 0x4 - core index']
  #allocation1 [shape = 'u32[144,128]{1,0:T(1,128)}', space=vmem, size = 0x12000, scoped, tag = 'internal scratch']
  #allocation2 [shape = 'f32[1,1]{1,0:T(1,128)S(1)}', space=vmem, size = 0x200, scoped, tag = 'scoped memory for tpu_custom_call.1']
  %s0 = inlined_call_operand.vmem [shape: f32[8,1], index: 0, kind: input, shape index: {}]
  %s1 = inlined_call_operand.vmem [shape: f32[8,32], index: 1, kind: input, shape index: {}]
  %s2 = inlined_call_operand.hbm [shape: f32[8,32], index: 2, kind: input, shape index: {}]
  %s3 = inlined_call_operand.vmem [shape: f32[1,128], index: 3, kind: input, shape index: {}]
  %s4 = inlined_call_operand.hbm [shape: f32[32,128], index: 4, kind: input, shape index: {}]
  %s5 = inlined_call_operand.vmem [shape: f32[1,128], index: 5, kind: input, shape index: {}]
  %s6 = inlined_call_operand.hbm [shape: f32[32,128], index: 6, kind: input, shape index: {}]
  %s7 = inlined_call_operand.vmem [shape: f32[1,128], index: 7, kind: input, shape index: {}]
  %s8 = inlined_call_operand.vmem [shape: f32[1,32], index: 8, kind: input, shape index: {}]
  %s9 = inlined_call_operand.<no memory space> [shape: f32[1,1], index: 9, kind: input, shape index: {}]
  %s10 = inlined_call_operand.hbm [shape: f32[8,8], index: 10, kind: output, shape index: {}]
  %s11 = sld [smem:[#allocation0]]
  $region62: #{tpu_custom_call.1} parent=0
    _
  %s13 = ssub.s32 1, %s11
  %s14 = scalar_select 0, %s13, %s11
  %v15 = vstv %s9
  %16 = vst [vmem:[#allocation2] sm:$0x1] %v15
  $region1: #{tpu_custom_call.1} parent=0
    #allocation3 [shape = 'u8[4096]{0}', space=vmem, size = 0x1000, scoped, tag = 'input window, operand 2, single buffered']
    #allocation4 [shape = 's32[1]{0}', space=sflag, size = 0x4, scoped, tag = 'scoped memory for tpu_custom_call.1']
    #allocation5 [shape = 's32[1]{0}', space=sflag, size = 0x4, scoped, tag = 'scoped memory for tpu_custom_call.1']
    #allocation6 [shape = 'u8[16384]{0}', space=vmem, size = 0x4000, scoped, tag = 'input window, operand 4, single buffered']
    #allocation7 [shape = 's32[1]{0}', space=sflag, size = 0x4, scoped, tag = 'scoped memory for tpu_custom_call.1']
    #allocation8 [shape = 'u8[16384]{0}', space=vmem, size = 0x4000, scoped, tag = 'input window, operand 6, single buffered']
    #allocation9 [shape = 'u8[4096]{0}', space=vmem, size = 0x1000, scoped, tag = 'output window, operand 0, single buffered']
    %17 = vsyncpa [#allocation4], 0
    %18 = vsyncpa [#allocation7], 0
    %19 = vsyncpa [#allocation5], 0
    // Predicated region
    $region2: #{tpu_custom_call.1} parent=1 // pred_check
      _
    $region3: #{tpu_custom_call.1} parent=1 // pred_check_branch
      %21 = sbr.rel (0) target = $region5
    $region4: #{tpu_custom_call.1} parent=1 // pred_region
      _
    $region5: #{tpu_custom_call.1} parent=1 // pred_fallthru
      _
    // Predicated region
    $region6: #{tpu_custom_call.1} parent=1 // pred_check
      _
    $region7: #{tpu_custom_call.1} parent=1 // pred_check_branch
      %23 = sbr.rel (0) target = $region9
    $region8: #{tpu_custom_call.1} parent=1 // pred_region
      _
    $region9: #{tpu_custom_call.1} parent=1 // pred_fallthru
      _
    // Predicated region
    $region10: #{tpu_custom_call.1} parent=1 // pred_check
      _
    $region11: #{tpu_custom_call.1} parent=1 // pred_check_branch
      %25 = sbr.rel (0) target = $region13
    $region12: #{tpu_custom_call.1} parent=1 // pred_region
      %s27 = ssub.s32 128, 128
      %28 = vsyncadd [#allocation4], %s27
      %s30 = sshll.u32 [#allocation3], 4
      %s31 = int_to_ptr.vmem [resolvable:$true] %s30
      %33 = dma.hbm_to_vmem [thread:$0]  %s2, 128, %s31, [#allocation4]
    $region13: #{tpu_custom_call.1} parent=1 // pred_fallthru
      _
    // Predicated region
    $region14: #{tpu_custom_call.1} parent=1 // pred_check
      _
    $region15: #{tpu_custom_call.1} parent=1 // pred_check_branch
      %35 = sbr.rel (0) target = $region17
    $region16: #{tpu_custom_call.1} parent=1 // pred_region
      _
    $region17: #{tpu_custom_call.1} parent=1 // pred_fallthru
      _
    // Predicated region
    $region18: #{tpu_custom_call.1} parent=1 // pred_check
      _
    $region19: #{tpu_custom_call.1} parent=1 // pred_check_branch
      %37 = sbr.rel (0) target = $region21
    $region20: #{tpu_custom_call.1} parent=1 // pred_region
      %s39 = ssub.s32 512, 512
      %40 = vsyncadd [#allocation7], %s39
      %s41 = sshll.u32 [#allocation6], 4
      %s42 = int_to_ptr.vmem [resolvable:$true] %s41
      %47 = dma.hbm_to_vmem [thread:$0]  %s4, 512, %s42, [#allocation7], 128, 128, 8
    $region21: #{tpu_custom_call.1} parent=1 // pred_fallthru
      _
    // Predicated region
    $region22: #{tpu_custom_call.1} parent=1 // pred_check
      _
    $region23: #{tpu_custom_call.1} parent=1 // pred_check_branch
      %49 = sbr.rel (0) target = $region25
    $region24: #{tpu_custom_call.1} parent=1 // pred_region
      _
    $region25: #{tpu_custom_call.1} parent=1 // pred_fallthru
      _
    // Predicated region
    $region26: #{tpu_custom_call.1} parent=1 // pred_check
      _
    $region27: #{tpu_custom_call.1} parent=1 // pred_check_branch
      %51 = sbr.rel (0) target = $region29
    $region28: #{tpu_custom_call.1} parent=1 // pred_region
      %s53 = ssub.s32 512, 512
      %54 = vsyncadd [#allocation7], %s53
      %s55 = sshll.u32 [#allocation8], 4
      %s56 = int_to_ptr.vmem [resolvable:$true] %s55
      %61 = dma.hbm_to_vmem [thread:$0]  %s6, 512, %s56, [#allocation7], 128, 128, 8
    $region29: #{tpu_custom_call.1} parent=1 // pred_fallthru
      _
    // Predicated region
    $region30: #{tpu_custom_call.1} parent=1 // pred_check
      _
    $region31: #{tpu_custom_call.1} parent=1 // pred_check_branch
      %63 = sbr.rel (0) target = $region33
    $region32: #{tpu_custom_call.1} parent=1 // pred_region
      _
    $region33: #{tpu_custom_call.1} parent=1 // pred_fallthru
      _
    // Predicated region
    $region34: #{tpu_custom_call.1} parent=1 // pred_check
      _
    $region35: #{tpu_custom_call.1} parent=1 // pred_check_branch
      %65 = sbr.rel (0) target = $region37
    $region36: #{tpu_custom_call.1} parent=1 // pred_region
      _
    $region37: #{tpu_custom_call.1} parent=1 // pred_fallthru
      _
    // Predicated region
    $region38: #{tpu_custom_call.1} parent=1 // pred_check
      _
    $region39: #{tpu_custom_call.1} parent=1 // pred_check_branch
      %67 = sbr.rel (0) target = $region41
    $region40: #{tpu_custom_call.1} parent=1 // pred_region
      _
    $region41: #{tpu_custom_call.1} parent=1 // pred_fallthru
      _
    // Predicated region
    $region42: #{tpu_custom_call.1} parent=1 // pred_check
      _
    $region43: #{tpu_custom_call.1} parent=1 // pred_check_branch
      %69 = sbr.rel (0) target = $region45
    $region44: #{tpu_custom_call.1} parent=1 // pred_region
      %70 = dma.done [#allocation4], 128
    $region45: #{tpu_custom_call.1} parent=1 // pred_fallthru
      _
    // Predicated region
    $region46: #{tpu_custom_call.1} parent=1 // pred_check
      _
    $region47: #{tpu_custom_call.1} parent=1 // pred_check_branch
      %72 = sbr.rel (0) target = $region49
    $region48: #{tpu_custom_call.1} parent=1 // pred_region
      %73 = dma.done [#allocation7], 512
    $region49: #{tpu_custom_call.1} parent=1 // pred_fallthru
      _
    // Predicated region
    $region50: #{tpu_custom_call.1} parent=1 // pred_check
      _
    $region51: #{tpu_custom_call.1} parent=1 // pred_check_branch
      %75 = sbr.rel (0) target = $region53
    $region52: #{tpu_custom_call.1} parent=1 // pred_region
      %76 = dma.done [#allocation7], 512
    $region53: #{tpu_custom_call.1} parent=1 // pred_fallthru
      _
    %v77 = vld [vmem:[%s3] sm:$0x1]
    %v78 = vld [vmem:[#allocation6] sm:$0xff]
    %v79 = vld [vmem:[#allocation6 + $0x8] sm:$0xff]
    %v80 = vld [vmem:[#allocation6 + $0x10] sm:$0xff]
    %v81 = vld [vmem:[#allocation6 + $0x18] sm:$0xff]
    %v82 = vld [vmem:[%s5] sm:$0x1]
    %v83 = vld [vmem:[#allocation8] sm:$0xff]
    %v84 = vld [vmem:[#allocation8 + $0x8] sm:$0xff]
    %v85 = vld [vmem:[#allocation8 + $0x10] sm:$0xff]
    %v86 = vld [vmem:[#allocation8 + $0x18] sm:$0xff]
    %v87 = vld [vmem:[%s7] sm:$0x1]
    %v88 = vld [vmem:[%s8] sm:$0x1]
    %v89 = vld [vmem:[#allocation2] sm:$0x1]
    %v90 = vld [vmem:[%s0] sm:$0xff]
    %92 = vset.pattern.permute.xlu0 0
    %93 = vperm.xlu0 %92, %v90
    %v94 = vpop.permute.xlu0 %93
    %v97 = vlaneseq
    %v98 = vshrl.u32 %v97, 7
    %v99 = vsub.s32 0, %v98
    %v100 = vrot.slane %v77, %v99
    %v102 = vmul.f32 %v94, %v100
    %v103 = vld [vmem:[%s1] sm:$0xff]
    %vm104 = vcmask 261120
    %v106 = vsel %vm104, %v103, 0
    %108 = vmatprep.subr.mxu0 0.0
    %109 = vmatpush1.msra.mxu0 0.0
    %110 = vmatprep.subr.mxu0 0.0
    %111 = vmatpush1.msra.mxu0 0.0
    %112 = vmatprep.subr.mxu0 0.0
    %113 = vmatpush1.msra.mxu0 0.0
    %114 = vmatprep.subr.mxu0 0.0
    %115 = vmatpush1.msra.mxu0 0.0
    %116 = vmatprep.subr.mxu0 0.0
    %117 = vmatpush1.msra.mxu0 0.0
    %118 = vmatprep.subr.mxu0 0.0
    %119 = vmatpush1.msra.mxu0 0.0
    %120 = vmatprep.subr.mxu0 0.0
    %121 = vmatpush1.msra.mxu0 0.0
    %122 = vmatprep.subr.mxu0 0.0
    %123 = vmatpush1.msra.mxu0 0.0
    %124 = vmatprep.subr.mxu0 0.0
    %125 = vmatpush1.msra.mxu0 0.0
    %126 = vmatprep.subr.mxu0 0.0
    %127 = vmatpush1.msra.mxu0 0.0
    %128 = vmatprep.subr.mxu0 0.0
    %129 = vmatpush1.msra.mxu0 0.0
    %130 = vmatprep.subr.mxu0 0.0
    %131 = vmatpush1.msra.mxu0 0.0
    %132 = vmatprep.subr.mxu0 0.0
    %133 = vmatpush1.msra.mxu0 %v81
    %134 = vmatprep.subr.mxu0 0.0
    %135 = vmatpush1.msra.mxu0 %v80
    %136 = vmatprep.subr.mxu0 0.0
    %137 = vmatpush1.msra.mxu0 %v79
    %138 = vmatprep.subr.mxu0 0.0
    %139 = vmatpush1.msra.mxu0 %v78
    %140 = vmatprep.subr.mxu0 0.0
    %141 = vmatpush2.msra.mxu0 0.0
    %142 = vmatprep.subr.mxu0 0.0
    %143 = vmatpush2.msra.mxu0 0.0
    %144 = vmatprep.subr.mxu0 0.0
    %145 = vmatpush2.msra.mxu0 0.0
    %146 = vmatprep.subr.mxu0 0.0
    %147 = vmatpush2.msra.mxu0 0.0
    %148 = vmatprep.subr.mxu0 0.0
    %149 = vmatpush2.msra.mxu0 0.0
    %150 = vmatprep.subr.mxu0 0.0
    %151 = vmatpush2.msra.mxu0 0.0
    %152 = vmatprep.subr.mxu0 0.0
    %153 = vmatpush2.msra.mxu0 0.0
    %154 = vmatprep.subr.mxu0 0.0
    %155 = vmatpush2.msra.mxu0 0.0
    %156 = vmatprep.subr.mxu0 0.0
    %157 = vmatpush2.msra.mxu0 0.0
    %158 = vmatprep.subr.mxu0 0.0
    %159 = vmatpush2.msra.mxu0 0.0
    %160 = vmatprep.subr.mxu0 0.0
    %161 = vmatpush2.msra.mxu0 0.0
    %162 = vmatprep.subr.mxu0 0.0
    %163 = vmatpush2.msra.mxu0 0.0
    %164 = vmatprep.subr.mxu0 0.0
    %165 = vmatpush2.msra.mxu0 0.0
    %166 = vmatprep.subr.mxu0 0.0
    %167 = vmatpush2.msra.mxu0 0.0
    %168 = vmatprep.subr.mxu0 0.0
    %169 = vmatpush2.msra.mxu0 0.0
    %170 = vmatprep.subr.mxu0 0.0
    %171 = vmatpush2.msra.mxu0 0.0
    %172 = vmatprep.mubr.f32.mxu0 0.0
    %173 = vmatmul.mubr.f32.gmra.mxu0 %v106
    %v174 = vpop.f32.mrf.mxu0
    %v175 = vadd.f32 0.0, %v174
    %v176 = vpop.f32.mrf.mxu0
    %177 = vdwg.mxu0
    %v178 = vadd.f32 %v102, %v175
    %v180 = vlaneseq
    %v181 = vshrl.u32 %v180, 7
    %v182 = vsub.s32 0, %v181
    %v183 = vrot.slane %v82, %v182
    %v185 = vadd.f32 %v178, %v183
    %v186 = vld [vmem:[#allocation3] sm:$0xff]
    %v187 = vxor.u32 %v185, 2147483648
    %v188 = vmul.f32 %v187, 1.442695
    %v189 = vpow.pop %v188
    %v190 = vadd.f32 %v189, 1.0
    %v191 = vrcp.pop %v190
    %v192 = vmul.f32 1.0, %v191
    %v193 = vmul.f32 %v192, 2.0
    %v194 = vsub.f32 %v193, 1.0
    %196 = vrot.lane.b32.xlu0 %v186, 32
    %v197 = vpop.permute.xlu0 %196
    %v199 = vmul.f32 %v192, %v197
    %201 = vrot.lane.b32.xlu0 %v194, 64
    %v202 = vpop.permute.xlu0 %201
    %v204 = vmul.f32 %v192, %v202
    %206 = vrot.lane.b32.xlu0 %v204, 32
    %v207 = vpop.permute.xlu0 %206
    %v209 = vadd.f32 %v199, %v207
    %v210 = vtanh.pop %v209
    %212 = vrot.lane.b32.xlu0 %v210, 64
    %v213 = vpop.permute.xlu0 %212
    %v215 = vmul.f32 %v192, %v213
    %v217 = vlaneseq
    %v218 = vshrl.u32 %v217, 7
    %v219 = vsub.s32 0, %v218
    %v220 = vrot.slane %v87, %v219
    %223 = vrot.lane.b32.xlu0 %v215, 32
    %v224 = vpop.permute.xlu0 %223
    %v225 = vsel %vm104, %v224, 0
    %227 = vmatprep.subr.mxu0 0.0
    %228 = vmatpush1.msra.mxu0 0.0
    %229 = vmatprep.subr.mxu0 0.0
    %230 = vmatpush1.msra.mxu0 0.0
    %231 = vmatprep.subr.mxu0 0.0
    %232 = vmatpush1.msra.mxu0 0.0
    %233 = vmatprep.subr.mxu0 0.0
    %234 = vmatpush1.msra.mxu0 0.0
    %235 = vmatprep.subr.mxu0 0.0
    %236 = vmatpush1.msra.mxu0 0.0
    %237 = vmatprep.subr.mxu0 0.0
    %238 = vmatpush1.msra.mxu0 0.0
    %239 = vmatprep.subr.mxu0 0.0
    %240 = vmatpush1.msra.mxu0 0.0
    %241 = vmatprep.subr.mxu0 0.0
    %242 = vmatpush1.msra.mxu0 0.0
    %243 = vmatprep.subr.mxu0 0.0
    %244 = vmatpush1.msra.mxu0 0.0
    %245 = vmatprep.subr.mxu0 0.0
    %246 = vmatpush1.msra.mxu0 0.0
    %247 = vmatprep.subr.mxu0 0.0
    %248 = vmatpush1.msra.mxu0 0.0
    %249 = vmatprep.subr.mxu0 0.0
    %250 = vmatpush1.msra.mxu0 0.0
    %251 = vmatprep.subr.mxu0 0.0
    %252 = vmatpush1.msra.mxu0 %v86
    %253 = vmatprep.subr.mxu0 0.0
    %254 = vmatpush1.msra.mxu0 %v85
    %255 = vmatprep.subr.mxu0 0.0
    %256 = vmatpush1.msra.mxu0 %v84
    %257 = vmatprep.subr.mxu0 0.0
    %258 = vmatpush1.msra.mxu0 %v83
    %259 = vmatprep.subr.mxu0 0.0
    %260 = vmatpush2.msra.mxu0 0.0
    %261 = vmatprep.subr.mxu0 0.0
    %262 = vmatpush2.msra.mxu0 0.0
    %263 = vmatprep.subr.mxu0 0.0
    %264 = vmatpush2.msra.mxu0 0.0
    %265 = vmatprep.subr.mxu0 0.0
    %266 = vmatpush2.msra.mxu0 0.0
    %267 = vmatprep.subr.mxu0 0.0
    %268 = vmatpush2.msra.mxu0 0.0
    %269 = vmatprep.subr.mxu0 0.0
    %270 = vmatpush2.msra.mxu0 0.0
    %271 = vmatprep.subr.mxu0 0.0
    %272 = vmatpush2.msra.mxu0 0.0
    %273 = vmatprep.subr.mxu0 0.0
    %274 = vmatpush2.msra.mxu0 0.0
    %275 = vmatprep.subr.mxu0 0.0
    %276 = vmatpush2.msra.mxu0 0.0
    %277 = vmatprep.subr.mxu0 0.0
    %278 = vmatpush2.msra.mxu0 0.0
    %279 = vmatprep.subr.mxu0 0.0
    %280 = vmatpush2.msra.mxu0 0.0
    %281 = vmatprep.subr.mxu0 0.0
    %282 = vmatpush2.msra.mxu0 0.0
    %283 = vmatprep.subr.mxu0 0.0
    %284 = vmatpush2.msra.mxu0 0.0
    %285 = vmatprep.subr.mxu0 0.0
    %286 = vmatpush2.msra.mxu0 0.0
    %287 = vmatprep.subr.mxu0 0.0
    %288 = vmatpush2.msra.mxu0 0.0
    %289 = vmatprep.subr.mxu0 0.0
    %290 = vmatpush2.msra.mxu0 0.0
    %291 = vmatprep.mubr.f32.mxu0 0.0
    %292 = vmatmul.mubr.f32.gmra.mxu0 %v225
    %v293 = vpop.f32.mrf.mxu0
    %v294 = vadd.f32 %v220, %v293
    %v295 = vpop.f32.mrf.mxu0
    %296 = vdwg.mxu0
    %v297 = vxor.u32 %v294, 2147483648
    %v298 = vmul.f32 %v297, 1.442695
    %v299 = vpow.pop %v298
    %v300 = vadd.f32 %v299, 1.0
    %v301 = vrcp.pop %v300
    %v302 = vmul.f32 1.0, %v301
    %v303 = vmul.f32 %v302, 2.0
    %v304 = vsub.f32 %v303, 1.0
    %v305 = vmul.f32 %v302, %v209
    %307 = vrot.lane.b32.xlu0 %v304, 64
    %v308 = vpop.permute.xlu0 %307
    %v310 = vmul.f32 %v302, %v308
    %312 = vrot.lane.b32.xlu0 %v310, 32
    %v313 = vpop.permute.xlu0 %312
    %v315 = vadd.f32 %v305, %v313
    %v316 = vtanh.pop %v315
    %318 = vrot.lane.b32.xlu0 %v316, 64
    %v319 = vpop.permute.xlu0 %318
    %v321 = vmul.f32 %v302, %v319
    %323 = vrot.lane.b32.xlu0 %v321, 32
    %v324 = vpop.permute.xlu0 %323
    %v325 = vsel %vm104, %v324, 0
    %327 = vmatprep.subr.mxu0 0.0
    %328 = vmatpush1.msra.mxu0 0.0
    %329 = vmatprep.subr.mxu0 0.0
    %330 = vmatpush1.msra.mxu0 0.0
    %331 = vmatprep.subr.mxu0 0.0
    %332 = vmatpush1.msra.mxu0 0.0
    %333 = vmatprep.subr.mxu0 0.0
    %334 = vmatpush1.msra.mxu0 0.0
    %335 = vmatprep.subr.mxu0 0.0
    %336 = vmatpush1.msra.mxu0 0.0
    %337 = vmatprep.subr.mxu0 0.0
    %338 = vmatpush1.msra.mxu0 0.0
    %339 = vmatprep.subr.mxu0 0.0
    %340 = vmatpush1.msra.mxu0 0.0
    %341 = vmatprep.subr.mxu0 0.0
    %342 = vmatpush1.msra.mxu0 0.0
    %343 = vmatprep.subr.mxu0 0.0
    %344 = vmatpush1.msra.mxu0 0.0
    %345 = vmatprep.subr.mxu0 0.0
    %346 = vmatpush1.msra.mxu0 0.0
    %347 = vmatprep.subr.mxu0 0.0
    %348 = vmatpush1.msra.mxu0 0.0
    %349 = vmatprep.subr.mxu0 0.0
    %350 = vmatpush1.msra.mxu0 0.0
    %351 = vmatprep.subr.mxu0 0.0
    %352 = vmatpush1.msra.mxu0 %v86
    %353 = vmatprep.subr.mxu0 0.0
    %354 = vmatpush1.msra.mxu0 %v85
    %355 = vmatprep.subr.mxu0 0.0
    %356 = vmatpush1.msra.mxu0 %v84
    %357 = vmatprep.subr.mxu0 0.0
    %358 = vmatpush1.msra.mxu0 %v83
    %359 = vmatprep.subr.mxu0 0.0
    %360 = vmatpush2.msra.mxu0 0.0
    %361 = vmatprep.subr.mxu0 0.0
    %362 = vmatpush2.msra.mxu0 0.0
    %363 = vmatprep.subr.mxu0 0.0
    %364 = vmatpush2.msra.mxu0 0.0
    %365 = vmatprep.subr.mxu0 0.0
    %366 = vmatpush2.msra.mxu0 0.0
    %367 = vmatprep.subr.mxu0 0.0
    %368 = vmatpush2.msra.mxu0 0.0
    %369 = vmatprep.subr.mxu0 0.0
    %370 = vmatpush2.msra.mxu0 0.0
    %371 = vmatprep.subr.mxu0 0.0
    %372 = vmatpush2.msra.mxu0 0.0
    %373 = vmatprep.subr.mxu0 0.0
    %374 = vmatpush2.msra.mxu0 0.0
    %375 = vmatprep.subr.mxu0 0.0
    %376 = vmatpush2.msra.mxu0 0.0
    %377 = vmatprep.subr.mxu0 0.0
    %378 = vmatpush2.msra.mxu0 0.0
    %379 = vmatprep.subr.mxu0 0.0
    %380 = vmatpush2.msra.mxu0 0.0
    %381 = vmatprep.subr.mxu0 0.0
    %382 = vmatpush2.msra.mxu0 0.0
    %383 = vmatprep.subr.mxu0 0.0
    %384 = vmatpush2.msra.mxu0 0.0
    %385 = vmatprep.subr.mxu0 0.0
    %386 = vmatpush2.msra.mxu0 0.0
    %387 = vmatprep.subr.mxu0 0.0
    %388 = vmatpush2.msra.mxu0 0.0
    %389 = vmatprep.subr.mxu0 0.0
    %390 = vmatpush2.msra.mxu0 0.0
    %391 = vmatprep.mubr.f32.mxu0 0.0
    %392 = vmatmul.mubr.f32.gmra.mxu0 %v325
    %v393 = vpop.f32.mrf.mxu0
    %v394 = vadd.f32 %v220, %v393
    %v395 = vpop.f32.mrf.mxu0
    %396 = vdwg.mxu0
    %v397 = vxor.u32 %v394, 2147483648
    %v398 = vmul.f32 %v397, 1.442695
    %v399 = vpow.pop %v398
    %v400 = vadd.f32 %v399, 1.0
    %v401 = vrcp.pop %v400
    %v402 = vmul.f32 1.0, %v401
    %v403 = vmul.f32 %v402, 2.0
    %v404 = vsub.f32 %v403, 1.0
    %v405 = vmul.f32 %v402, %v315
    %407 = vrot.lane.b32.xlu0 %v404, 64
    %v408 = vpop.permute.xlu0 %407
    %v410 = vmul.f32 %v402, %v408
    %412 = vrot.lane.b32.xlu0 %v410, 32
    %v413 = vpop.permute.xlu0 %412
    %v415 = vadd.f32 %v405, %v413
    %v416 = vtanh.pop %v415
    %418 = vrot.lane.b32.xlu0 %v416, 64
    %v419 = vpop.permute.xlu0 %418
    %v421 = vmul.f32 %v402, %v419
    %423 = vrot.lane.b32.xlu0 %v421, 32
    %v424 = vpop.permute.xlu0 %423
    %v425 = vsel %vm104, %v424, 0
    %427 = vmatprep.subr.mxu0 0.0
    %428 = vmatpush1.msra.mxu0 0.0
    %429 = vmatprep.subr.mxu0 0.0
    %430 = vmatpush1.msra.mxu0 0.0
    %431 = vmatprep.subr.mxu0 0.0
    %432 = vmatpush1.msra.mxu0 0.0
    %433 = vmatprep.subr.mxu0 0.0
    %434 = vmatpush1.msra.mxu0 0.0
    %435 = vmatprep.subr.mxu0 0.0
    %436 = vmatpush1.msra.mxu0 0.0
    %437 = vmatprep.subr.mxu0 0.0
    %438 = vmatpush1.msra.mxu0 0.0
    %439 = vmatprep.subr.mxu0 0.0
    %440 = vmatpush1.msra.mxu0 0.0
    %441 = vmatprep.subr.mxu0 0.0
    %442 = vmatpush1.msra.mxu0 0.0
    %443 = vmatprep.subr.mxu0 0.0
    %444 = vmatpush1.msra.mxu0 0.0
    %445 = vmatprep.subr.mxu0 0.0
    %446 = vmatpush1.msra.mxu0 0.0
    %447 = vmatprep.subr.mxu0 0.0
    %448 = vmatpush1.msra.mxu0 0.0
    %449 = vmatprep.subr.mxu0 0.0
    %450 = vmatpush1.msra.mxu0 0.0
    %451 = vmatprep.subr.mxu0 0.0
    %452 = vmatpush1.msra.mxu0 %v86
    %453 = vmatprep.subr.mxu0 0.0
    %454 = vmatpush1.msra.mxu0 %v85
    %455 = vmatprep.subr.mxu0 0.0
    %456 = vmatpush1.msra.mxu0 %v84
    %457 = vmatprep.subr.mxu0 0.0
    %458 = vmatpush1.msra.mxu0 %v83
    %459 = vmatprep.subr.mxu0 0.0
    %460 = vmatpush2.msra.mxu0 0.0
    %461 = vmatprep.subr.mxu0 0.0
    %462 = vmatpush2.msra.mxu0 0.0
    %463 = vmatprep.subr.mxu0 0.0
    %464 = vmatpush2.msra.mxu0 0.0
    %465 = vmatprep.subr.mxu0 0.0
    %466 = vmatpush2.msra.mxu0 0.0
    %467 = vmatprep.subr.mxu0 0.0
    %468 = vmatpush2.msra.mxu0 0.0
    %469 = vmatprep.subr.mxu0 0.0
    %470 = vmatpush2.msra.mxu0 0.0
    %471 = vmatprep.subr.mxu0 0.0
    %472 = vmatpush2.msra.mxu0 0.0
    %473 = vmatprep.subr.mxu0 0.0
    %474 = vmatpush2.msra.mxu0 0.0
    %475 = vmatprep.subr.mxu0 0.0
    %476 = vmatpush2.msra.mxu0 0.0
    %477 = vmatprep.subr.mxu0 0.0
    %478 = vmatpush2.msra.mxu0 0.0
    %479 = vmatprep.subr.mxu0 0.0
    %480 = vmatpush2.msra.mxu0 0.0
    %481 = vmatprep.subr.mxu0 0.0
    %482 = vmatpush2.msra.mxu0 0.0
    %483 = vmatprep.subr.mxu0 0.0
    %484 = vmatpush2.msra.mxu0 0.0
    %485 = vmatprep.subr.mxu0 0.0
    %486 = vmatpush2.msra.mxu0 0.0
    %487 = vmatprep.subr.mxu0 0.0
    %488 = vmatpush2.msra.mxu0 0.0
    %489 = vmatprep.subr.mxu0 0.0
    %490 = vmatpush2.msra.mxu0 0.0
    %491 = vmatprep.mubr.f32.mxu0 0.0
    %492 = vmatmul.mubr.f32.gmra.mxu0 %v425
    %v493 = vpop.f32.mrf.mxu0
    %v494 = vadd.f32 %v220, %v493
    %v495 = vpop.f32.mrf.mxu0
    %496 = vdwg.mxu0
    %v497 = vxor.u32 %v494, 2147483648
    %v498 = vmul.f32 %v497, 1.442695
    %v499 = vpow.pop %v498
    %v500 = vadd.f32 %v499, 1.0
    %v501 = vrcp.pop %v500
    %v502 = vmul.f32 1.0, %v501
    %v503 = vmul.f32 %v502, 2.0
    %v504 = vsub.f32 %v503, 1.0
    %v505 = vmul.f32 %v502, %v415
    %507 = vrot.lane.b32.xlu0 %v504, 64
    %v508 = vpop.permute.xlu0 %507
    %v510 = vmul.f32 %v502, %v508
    %512 = vrot.lane.b32.xlu0 %v510, 32
    %v513 = vpop.permute.xlu0 %512
    %v515 = vadd.f32 %v505, %v513
    %v516 = vtanh.pop %v515
    %518 = vrot.lane.b32.xlu0 %v516, 64
    %v519 = vpop.permute.xlu0 %518
    %v521 = vmul.f32 %v502, %v519
    %523 = vrot.lane.b32.xlu0 %v521, 32
    %v524 = vpop.permute.xlu0 %523
    %v525 = vsel %vm104, %v524, 0
    %527 = vmatprep.subr.mxu0 0.0
    %528 = vmatpush1.msra.mxu0 0.0
    %529 = vmatprep.subr.mxu0 0.0
    %530 = vmatpush1.msra.mxu0 0.0
    %531 = vmatprep.subr.mxu0 0.0
    %532 = vmatpush1.msra.mxu0 0.0
    %533 = vmatprep.subr.mxu0 0.0
    %534 = vmatpush1.msra.mxu0 0.0
    %535 = vmatprep.subr.mxu0 0.0
    %536 = vmatpush1.msra.mxu0 0.0
    %537 = vmatprep.subr.mxu0 0.0
    %538 = vmatpush1.msra.mxu0 0.0
    %539 = vmatprep.subr.mxu0 0.0
    %540 = vmatpush1.msra.mxu0 0.0
    %541 = vmatprep.subr.mxu0 0.0
    %542 = vmatpush1.msra.mxu0 0.0
    %543 = vmatprep.subr.mxu0 0.0
    %544 = vmatpush1.msra.mxu0 0.0
    %545 = vmatprep.subr.mxu0 0.0
    %546 = vmatpush1.msra.mxu0 0.0
    %547 = vmatprep.subr.mxu0 0.0
    %548 = vmatpush1.msra.mxu0 0.0
    %549 = vmatprep.subr.mxu0 0.0
    %550 = vmatpush1.msra.mxu0 0.0
    %551 = vmatprep.subr.mxu0 0.0
    %552 = vmatpush1.msra.mxu0 %v86
    %553 = vmatprep.subr.mxu0 0.0
    %554 = vmatpush1.msra.mxu0 %v85
    %555 = vmatprep.subr.mxu0 0.0
    %556 = vmatpush1.msra.mxu0 %v84
    %557 = vmatprep.subr.mxu0 0.0
    %558 = vmatpush1.msra.mxu0 %v83
    %559 = vmatprep.subr.mxu0 0.0
    %560 = vmatpush2.msra.mxu0 0.0
    %561 = vmatprep.subr.mxu0 0.0
    %562 = vmatpush2.msra.mxu0 0.0
    %563 = vmatprep.subr.mxu0 0.0
    %564 = vmatpush2.msra.mxu0 0.0
    %565 = vmatprep.subr.mxu0 0.0
    %566 = vmatpush2.msra.mxu0 0.0
    %567 = vmatprep.subr.mxu0 0.0
    %568 = vmatpush2.msra.mxu0 0.0
    %569 = vmatprep.subr.mxu0 0.0
    %570 = vmatpush2.msra.mxu0 0.0
    %571 = vmatprep.subr.mxu0 0.0
    %572 = vmatpush2.msra.mxu0 0.0
    %573 = vmatprep.subr.mxu0 0.0
    %574 = vmatpush2.msra.mxu0 0.0
    %575 = vmatprep.subr.mxu0 0.0
    %576 = vmatpush2.msra.mxu0 0.0
    %577 = vmatprep.subr.mxu0 0.0
    %578 = vmatpush2.msra.mxu0 0.0
    %579 = vmatprep.subr.mxu0 0.0
    %580 = vmatpush2.msra.mxu0 0.0
    %581 = vmatprep.subr.mxu0 0.0
    %582 = vmatpush2.msra.mxu0 0.0
    %583 = vmatprep.subr.mxu0 0.0
    %584 = vmatpush2.msra.mxu0 0.0
    %585 = vmatprep.subr.mxu0 0.0
    %586 = vmatpush2.msra.mxu0 0.0
    %587 = vmatprep.subr.mxu0 0.0
    %588 = vmatpush2.msra.mxu0 0.0
    %589 = vmatprep.subr.mxu0 0.0
    %590 = vmatpush2.msra.mxu0 0.0
    %591 = vmatprep.mubr.f32.mxu0 0.0
    %592 = vmatmul.mubr.f32.gmra.mxu0 %v525
    %v593 = vpop.f32.mrf.mxu0
    %v594 = vadd.f32 %v220, %v593
    %v595 = vpop.f32.mrf.mxu0
    %596 = vdwg.mxu0
    %v597 = vxor.u32 %v594, 2147483648
    %v598 = vmul.f32 %v597, 1.442695
    %v599 = vpow.pop %v598
    %v600 = vadd.f32 %v599, 1.0
    %v601 = vrcp.pop %v600
    %v602 = vmul.f32 1.0, %v601
    %v603 = vmul.f32 %v602, 2.0
    %v604 = vsub.f32 %v603, 1.0
    %v605 = vmul.f32 %v602, %v515
    %607 = vrot.lane.b32.xlu0 %v604, 64
    %v608 = vpop.permute.xlu0 %607
    %v610 = vmul.f32 %v602, %v608
    %612 = vrot.lane.b32.xlu0 %v610, 32
    %v613 = vpop.permute.xlu0 %612
    %v615 = vadd.f32 %v605, %v613
    %v616 = vtanh.pop %v615
    %618 = vrot.lane.b32.xlu0 %v616, 64
    %v619 = vpop.permute.xlu0 %618
    %v621 = vmul.f32 %v602, %v619
    %623 = vrot.lane.b32.xlu0 %v621, 32
    %v624 = vpop.permute.xlu0 %623
    %v625 = vsel %vm104, %v624, 0
    %627 = vmatprep.subr.mxu0 0.0
    %628 = vmatpush1.msra.mxu0 0.0
    %629 = vmatprep.subr.mxu0 0.0
    %630 = vmatpush1.msra.mxu0 0.0
    %631 = vmatprep.subr.mxu0 0.0
    %632 = vmatpush1.msra.mxu0 0.0
    %633 = vmatprep.subr.mxu0 0.0
    %634 = vmatpush1.msra.mxu0 0.0
    %635 = vmatprep.subr.mxu0 0.0
    %636 = vmatpush1.msra.mxu0 0.0
    %637 = vmatprep.subr.mxu0 0.0
    %638 = vmatpush1.msra.mxu0 0.0
    %639 = vmatprep.subr.mxu0 0.0
    %640 = vmatpush1.msra.mxu0 0.0
    %641 = vmatprep.subr.mxu0 0.0
    %642 = vmatpush1.msra.mxu0 0.0
    %643 = vmatprep.subr.mxu0 0.0
    %644 = vmatpush1.msra.mxu0 0.0
    %645 = vmatprep.subr.mxu0 0.0
    %646 = vmatpush1.msra.mxu0 0.0
    %647 = vmatprep.subr.mxu0 0.0
    %648 = vmatpush1.msra.mxu0 0.0
    %649 = vmatprep.subr.mxu0 0.0
    %650 = vmatpush1.msra.mxu0 0.0
    %651 = vmatprep.subr.mxu0 0.0
    %652 = vmatpush1.msra.mxu0 %v86
    %653 = vmatprep.subr.mxu0 0.0
    %654 = vmatpush1.msra.mxu0 %v85
    %655 = vmatprep.subr.mxu0 0.0
    %656 = vmatpush1.msra.mxu0 %v84
    %657 = vmatprep.subr.mxu0 0.0
    %658 = vmatpush1.msra.mxu0 %v83
    %659 = vmatprep.subr.mxu0 0.0
    %660 = vmatpush2.msra.mxu0 0.0
    %661 = vmatprep.subr.mxu0 0.0
    %662 = vmatpush2.msra.mxu0 0.0
    %663 = vmatprep.subr.mxu0 0.0
    %664 = vmatpush2.msra.mxu0 0.0
    %665 = vmatprep.subr.mxu0 0.0
    %666 = vmatpush2.msra.mxu0 0.0
    %667 = vmatprep.subr.mxu0 0.0
    %668 = vmatpush2.msra.mxu0 0.0
    %669 = vmatprep.subr.mxu0 0.0
    %670 = vmatpush2.msra.mxu0 0.0
    %671 = vmatprep.subr.mxu0 0.0
    %672 = vmatpush2.msra.mxu0 0.0
    %673 = vmatprep.subr.mxu0 0.0
    %674 = vmatpush2.msra.mxu0 0.0
    %675 = vmatprep.subr.mxu0 0.0
    %676 = vmatpush2.msra.mxu0 0.0
    %677 = vmatprep.subr.mxu0 0.0
    %678 = vmatpush2.msra.mxu0 0.0
    %679 = vmatprep.subr.mxu0 0.0
    %680 = vmatpush2.msra.mxu0 0.0
    %681 = vmatprep.subr.mxu0 0.0
    %682 = vmatpush2.msra.mxu0 0.0
    %683 = vmatprep.subr.mxu0 0.0
    %684 = vmatpush2.msra.mxu0 0.0
    %685 = vmatprep.subr.mxu0 0.0
    %686 = vmatpush2.msra.mxu0 0.0
    %687 = vmatprep.subr.mxu0 0.0
    %688 = vmatpush2.msra.mxu0 0.0
    %689 = vmatprep.subr.mxu0 0.0
    %690 = vmatpush2.msra.mxu0 0.0
    %691 = vmatprep.mubr.f32.mxu0 0.0
    %692 = vmatmul.mubr.f32.gmra.mxu0 %v625
    %v693 = vpop.f32.mrf.mxu0
    %v694 = vadd.f32 %v220, %v693
    %v695 = vpop.f32.mrf.mxu0
    %696 = vdwg.mxu0
    %v697 = vxor.u32 %v694, 2147483648
    %v698 = vmul.f32 %v697, 1.442695
    %v699 = vpow.pop %v698
    %v700 = vadd.f32 %v699, 1.0
    %v701 = vrcp.pop %v700
    %v702 = vmul.f32 1.0, %v701
    %v703 = vmul.f32 %v702, 2.0
    %v704 = vsub.f32 %v703, 1.0
    %v705 = vmul.f32 %v702, %v615
    %707 = vrot.lane.b32.xlu0 %v704, 64
    %v708 = vpop.permute.xlu0 %707
    %v710 = vmul.f32 %v702, %v708
    %712 = vrot.lane.b32.xlu0 %v710, 32
    %v713 = vpop.permute.xlu0 %712
    %v715 = vadd.f32 %v705, %v713
    %v716 = vtanh.pop %v715
    %718 = vrot.lane.b32.xlu0 %v716, 64
    %v719 = vpop.permute.xlu0 %718
    %v721 = vmul.f32 %v702, %v719
    %723 = vrot.lane.b32.xlu0 %v721, 32
    %v724 = vpop.permute.xlu0 %723
    %v725 = vsel %vm104, %v724, 0
    %727 = vmatprep.subr.mxu0 0.0
    %728 = vmatpush1.msra.mxu0 0.0
    %729 = vmatprep.subr.mxu0 0.0
    %730 = vmatpush1.msra.mxu0 0.0
    %731 = vmatprep.subr.mxu0 0.0
    %732 = vmatpush1.msra.mxu0 0.0
    %733 = vmatprep.subr.mxu0 0.0
    %734 = vmatpush1.msra.mxu0 0.0
    %735 = vmatprep.subr.mxu0 0.0
    %736 = vmatpush1.msra.mxu0 0.0
    %737 = vmatprep.subr.mxu0 0.0
    %738 = vmatpush1.msra.mxu0 0.0
    %739 = vmatprep.subr.mxu0 0.0
    %740 = vmatpush1.msra.mxu0 0.0
    %741 = vmatprep.subr.mxu0 0.0
    %742 = vmatpush1.msra.mxu0 0.0
    %743 = vmatprep.subr.mxu0 0.0
    %744 = vmatpush1.msra.mxu0 0.0
    %745 = vmatprep.subr.mxu0 0.0
    %746 = vmatpush1.msra.mxu0 0.0
    %747 = vmatprep.subr.mxu0 0.0
    %748 = vmatpush1.msra.mxu0 0.0
    %749 = vmatprep.subr.mxu0 0.0
    %750 = vmatpush1.msra.mxu0 0.0
    %751 = vmatprep.subr.mxu0 0.0
    %752 = vmatpush1.msra.mxu0 %v86
    %753 = vmatprep.subr.mxu0 0.0
    %754 = vmatpush1.msra.mxu0 %v85
    %755 = vmatprep.subr.mxu0 0.0
    %756 = vmatpush1.msra.mxu0 %v84
    %757 = vmatprep.subr.mxu0 0.0
    %758 = vmatpush1.msra.mxu0 %v83
    %759 = vmatprep.subr.mxu0 0.0
    %760 = vmatpush2.msra.mxu0 0.0
    %761 = vmatprep.subr.mxu0 0.0
    %762 = vmatpush2.msra.mxu0 0.0
    %763 = vmatprep.subr.mxu0 0.0
    %764 = vmatpush2.msra.mxu0 0.0
    %765 = vmatprep.subr.mxu0 0.0
    %766 = vmatpush2.msra.mxu0 0.0
    %767 = vmatprep.subr.mxu0 0.0
    %768 = vmatpush2.msra.mxu0 0.0
    %769 = vmatprep.subr.mxu0 0.0
    %770 = vmatpush2.msra.mxu0 0.0
    %771 = vmatprep.subr.mxu0 0.0
    %772 = vmatpush2.msra.mxu0 0.0
    %773 = vmatprep.subr.mxu0 0.0
    %774 = vmatpush2.msra.mxu0 0.0
    %775 = vmatprep.subr.mxu0 0.0
    %776 = vmatpush2.msra.mxu0 0.0
    %777 = vmatprep.subr.mxu0 0.0
    %778 = vmatpush2.msra.mxu0 0.0
    %779 = vmatprep.subr.mxu0 0.0
    %780 = vmatpush2.msra.mxu0 0.0
    %781 = vmatprep.subr.mxu0 0.0
    %782 = vmatpush2.msra.mxu0 0.0
    %783 = vmatprep.subr.mxu0 0.0
    %784 = vmatpush2.msra.mxu0 0.0
    %785 = vmatprep.subr.mxu0 0.0
    %786 = vmatpush2.msra.mxu0 0.0
    %787 = vmatprep.subr.mxu0 0.0
    %788 = vmatpush2.msra.mxu0 0.0
    %789 = vmatprep.subr.mxu0 0.0
    %790 = vmatpush2.msra.mxu0 0.0
    %791 = vmatprep.mubr.f32.mxu0 0.0
    %792 = vmatmul.mubr.f32.gmra.mxu0 %v725
    %v793 = vpop.f32.mrf.mxu0
    %v794 = vadd.f32 %v220, %v793
    %v795 = vpop.f32.mrf.mxu0
    %796 = vdwg.mxu0
    %v797 = vxor.u32 %v794, 2147483648
    %v798 = vmul.f32 %v797, 1.442695
    %v799 = vpow.pop %v798
    %v800 = vadd.f32 %v799, 1.0
    %v801 = vrcp.pop %v800
    %v802 = vmul.f32 1.0, %v801
    %v803 = vmul.f32 %v802, 2.0
    %v804 = vsub.f32 %v803, 1.0
    %v805 = vmul.f32 %v802, %v715
    %807 = vrot.lane.b32.xlu0 %v804, 64
    %v808 = vpop.permute.xlu0 %807
    %v810 = vmul.f32 %v802, %v808
    %812 = vrot.lane.b32.xlu0 %v810, 32
    %v813 = vpop.permute.xlu0 %812
    %v815 = vadd.f32 %v805, %v813
    %v816 = vtanh.pop %v815
    %818 = vrot.lane.b32.xlu0 %v816, 64
    %v819 = vpop.permute.xlu0 %818
    %v821 = vmul.f32 %v802, %v819
    %823 = vrot.lane.b32.xlu0 %v821, 32
    %v824 = vpop.permute.xlu0 %823
    %v825 = vsel %vm104, %v824, 0
    %827 = vmatprep.subr.mxu0 0.0
    %828 = vmatpush1.msra.mxu0 0.0
    %829 = vmatprep.subr.mxu0 0.0
    %830 = vmatpush1.msra.mxu0 0.0
    %831 = vmatprep.subr.mxu0 0.0
    %832 = vmatpush1.msra.mxu0 0.0
    %833 = vmatprep.subr.mxu0 0.0
    %834 = vmatpush1.msra.mxu0 0.0
    %835 = vmatprep.subr.mxu0 0.0
    %836 = vmatpush1.msra.mxu0 0.0
    %837 = vmatprep.subr.mxu0 0.0
    %838 = vmatpush1.msra.mxu0 0.0
    %839 = vmatprep.subr.mxu0 0.0
    %840 = vmatpush1.msra.mxu0 0.0
    %841 = vmatprep.subr.mxu0 0.0
    %842 = vmatpush1.msra.mxu0 0.0
    %843 = vmatprep.subr.mxu0 0.0
    %844 = vmatpush1.msra.mxu0 0.0
    %845 = vmatprep.subr.mxu0 0.0
    %846 = vmatpush1.msra.mxu0 0.0
    %847 = vmatprep.subr.mxu0 0.0
    %848 = vmatpush1.msra.mxu0 0.0
    %849 = vmatprep.subr.mxu0 0.0
    %850 = vmatpush1.msra.mxu0 0.0
    %851 = vmatprep.subr.mxu0 0.0
    %852 = vmatpush1.msra.mxu0 %v86
    %853 = vmatprep.subr.mxu0 0.0
    %854 = vmatpush1.msra.mxu0 %v85
    %855 = vmatprep.subr.mxu0 0.0
    %856 = vmatpush1.msra.mxu0 %v84
    %857 = vmatprep.subr.mxu0 0.0
    %858 = vmatpush1.msra.mxu0 %v83
    %859 = vmatprep.subr.mxu0 0.0
    %860 = vmatpush2.msra.mxu0 0.0
    %861 = vmatprep.subr.mxu0 0.0
    %862 = vmatpush2.msra.mxu0 0.0
    %863 = vmatprep.subr.mxu0 0.0
    %864 = vmatpush2.msra.mxu0 0.0
    %865 = vmatprep.subr.mxu0 0.0
    %866 = vmatpush2.msra.mxu0 0.0
    %867 = vmatprep.subr.mxu0 0.0
    %868 = vmatpush2.msra.mxu0 0.0
    %869 = vmatprep.subr.mxu0 0.0
    %870 = vmatpush2.msra.mxu0 0.0
    %871 = vmatprep.subr.mxu0 0.0
    %872 = vmatpush2.msra.mxu0 0.0
    %873 = vmatprep.subr.mxu0 0.0
    %874 = vmatpush2.msra.mxu0 0.0
    %875 = vmatprep.subr.mxu0 0.0
    %876 = vmatpush2.msra.mxu0 0.0
    %877 = vmatprep.subr.mxu0 0.0
    %878 = vmatpush2.msra.mxu0 0.0
    %879 = vmatprep.subr.mxu0 0.0
    %880 = vmatpush2.msra.mxu0 0.0
    %881 = vmatprep.subr.mxu0 0.0
    %882 = vmatpush2.msra.mxu0 0.0
    %883 = vmatprep.subr.mxu0 0.0
    %884 = vmatpush2.msra.mxu0 0.0
    %885 = vmatprep.subr.mxu0 0.0
    %886 = vmatpush2.msra.mxu0 0.0
    %887 = vmatprep.subr.mxu0 0.0
    %888 = vmatpush2.msra.mxu0 0.0
    %889 = vmatprep.subr.mxu0 0.0
    %890 = vmatpush2.msra.mxu0 0.0
    %891 = vmatprep.mubr.f32.mxu0 0.0
    %892 = vmatmul.mubr.f32.gmra.mxu0 %v825
    %v893 = vpop.f32.mrf.mxu0
    %v894 = vadd.f32 %v220, %v893
    %v895 = vpop.f32.mrf.mxu0
    %896 = vdwg.mxu0
    %v897 = vxor.u32 %v894, 2147483648
    %v898 = vmul.f32 %v897, 1.442695
    %v899 = vpow.pop %v898
    %v900 = vadd.f32 %v899, 1.0
    %v901 = vrcp.pop %v900
    %v902 = vmul.f32 1.0, %v901
    %v903 = vmul.f32 %v902, 2.0
    %v904 = vsub.f32 %v903, 1.0
    %v905 = vmul.f32 %v902, %v815
    %907 = vrot.lane.b32.xlu0 %v904, 64
    %v908 = vpop.permute.xlu0 %907
    %v910 = vmul.f32 %v902, %v908
    %912 = vrot.lane.b32.xlu0 %v910, 32
    %v913 = vpop.permute.xlu0 %912
    %v915 = vadd.f32 %v905, %v913
    %v916 = vtanh.pop %v915
    %918 = vrot.lane.b32.xlu0 %v916, 64
    %v919 = vpop.permute.xlu0 %918
    %v921 = vmul.f32 %v902, %v919
    %v923 = vlaneseq
    %v924 = vshrl.u32 %v923, 7
    %v925 = vsub.s32 0, %v924
    %v926 = vrot.slane %v88, %v925
    %927 = vrot.lane.b32.xlu0 %v926, 96
    %v928 = vpop.permute.xlu0 %927
    %v930 = vmul.f32 %v215, %v928
    %932 = vrot.lane.b32.xlu0 %v930, 32
    %v933 = vpop.permute.xlu0 %932
    %v935 = vsel %vm104, %v933, 0.0
    %936 = vadd.xlane.f32.xlu0 %v935
    %v937 = vpop.xlane.xlu0 %936
    %v939 = vlaneseq
    %v940 = vshrl.u32 %v939, 7
    %v941 = vsub.s32 0, %v940
    %v942 = vrot.slane %v89, %v941
    %v944 = vadd.f32 %v937, %v942
    %v945 = vmul.f32 %v321, %v928
    %947 = vrot.lane.b32.xlu0 %v945, 32
    %v948 = vpop.permute.xlu0 %947
    %v950 = vsel %vm104, %v948, 0.0
    %951 = vadd.xlane.f32.xlu0 %v950
    %v952 = vpop.xlane.xlu0 %951
    %v953 = vadd.f32 %v952, %v942
    %v954 = vmul.f32 %v421, %v928
    %956 = vrot.lane.b32.xlu0 %v954, 32
    %v957 = vpop.permute.xlu0 %956
    %v959 = vsel %vm104, %v957, 0.0
    %960 = vadd.xlane.f32.xlu0 %v959
    %v961 = vpop.xlane.xlu0 %960
    %v962 = vadd.f32 %v961, %v942
    %v963 = vmul.f32 %v521, %v928
    %965 = vrot.lane.b32.xlu0 %v963, 32
    %v966 = vpop.permute.xlu0 %965
    %v968 = vsel %vm104, %v966, 0.0
    %969 = vadd.xlane.f32.xlu0 %v968
    %v970 = vpop.xlane.xlu0 %969
    %v971 = vadd.f32 %v970, %v942
    %v972 = vmul.f32 %v621, %v928
    %974 = vrot.lane.b32.xlu0 %v972, 32
    %v975 = vpop.permute.xlu0 %974
    %v977 = vsel %vm104, %v975, 0.0
    %978 = vadd.xlane.f32.xlu0 %v977
    %v979 = vpop.xlane.xlu0 %978
    %v980 = vadd.f32 %v979, %v942
    %v981 = vmul.f32 %v721, %v928
    %983 = vrot.lane.b32.xlu0 %v981, 32
    %v984 = vpop.permute.xlu0 %983
    %v986 = vsel %vm104, %v984, 0.0
    %987 = vadd.xlane.f32.xlu0 %v986
    %v988 = vpop.xlane.xlu0 %987
    %v989 = vadd.f32 %v988, %v942
    %v990 = vmul.f32 %v821, %v928
    %992 = vrot.lane.b32.xlu0 %v990, 32
    %v993 = vpop.permute.xlu0 %992
    %v995 = vsel %vm104, %v993, 0.0
    %996 = vadd.xlane.f32.xlu0 %v995
    %v997 = vpop.xlane.xlu0 %996
    %v998 = vadd.f32 %v997, %v942
    %v999 = vmul.f32 %v921, %v928
    %1001 = vrot.lane.b32.xlu0 %v999, 32
    %v1002 = vpop.permute.xlu0 %1001
    %v1004 = vsel %vm104, %v1002, 0.0
    %1005 = vadd.xlane.f32.xlu0 %v1004
    %v1006 = vpop.xlane.xlu0 %1005
    %v1007 = vadd.f32 %v1006, %v942
    %1009 = vrot.lane.b32.xlu0 %v953, 1
    %v1010 = vpop.permute.xlu0 %1009
    %1013 = vrot.lane.b32.xlu0 %v962, 2
    %v1014 = vpop.permute.xlu0 %1013
    %1017 = vrot.lane.b32.xlu0 %v971, 3
    %v1018 = vpop.permute.xlu0 %1017
    %1021 = vrot.lane.b32.xlu0 %v980, 4
    %v1022 = vpop.permute.xlu0 %1021
    %1025 = vrot.lane.b32.xlu0 %v989, 5
    %v1026 = vpop.permute.xlu0 %1025
    %1029 = vrot.lane.b32.xlu0 %v998, 6
    %v1030 = vpop.permute.xlu0 %1029
    %1033 = vrot.lane.b32.xlu0 %v1007, 7
    %v1034 = vpop.permute.xlu0 %1033
    %vm1036 = vcmask 7168
    %v1037 = vsel %vm1036, %v944, %v1010
    %vm1038 = vcmask 15360
    %v1039 = vsel %vm1038, %v1037, %v1014
    %vm1040 = vcmask 23552
    %v1041 = vsel %vm1040, %v1039, %v1018
    %vm1042 = vcmask 31744
    %v1043 = vsel %vm1042, %v1041, %v1022
    %vm1044 = vcmask 39936
    %v1045 = vsel %vm1044, %v1043, %v1026
    %vm1046 = vcmask 48128
    %v1047 = vsel %vm1046, %v1045, %v1030
    %vm1048 = vcmask 56320
    %v1049 = vsel %vm1048, %v1047, %v1034
    %vm1050 = vcmask 64512
    %1051 = vst.msk [vmem:[#allocation9] sm:$0xff] %vm1050, %v1049
    // Predicated region
    $region54: #{tpu_custom_call.1} parent=1 // pred_check
      _
    $region55: #{tpu_custom_call.1} parent=1 // pred_check_branch
      %1053 = sbr.rel (0) target = $region57
    $region56: #{tpu_custom_call.1} parent=1 // pred_region
      %s1055 = ssub.s32 128, 128
      %1056 = vsyncadd [#allocation5], %s1055
      %s1058 = sshll.u32 [#allocation9], 4
      %s1059 = int_to_ptr.vmem [resolvable:$true] %s1058
      %1061 = dma.vmem_to_hbm [thread:$0]  %s1059, 128, %s10, [#allocation5]
    $region57: #{tpu_custom_call.1} parent=1 // pred_fallthru
      _
    // Predicated region
    $region58: #{tpu_custom_call.1} parent=1 // pred_check
      _
    $region59: #{tpu_custom_call.1} parent=1 // pred_check_branch
      %1063 = sbr.rel (0) target = $region61
    $region60: #{tpu_custom_call.1} parent=1 // pred_region
      %1064 = dma.done [#allocation5], 128
    $region61: #{tpu_custom_call.1} parent=1 // pred_fallthru
      _
    %1065 = vsyncpa [#allocation4], 1
    %1066 = vsyncpa [#allocation7], 1
    %1067 = vsyncpa [#allocation5], 1

</llo_original>
